<compile_context>
chip_gen: v7x
topology: tpu7x:2x2x1
jax: 0.10.0
libtpu: 0.0.40
codegen_flags: <defaults>
</compile_context>

<pallas_src>
import functools

import jax
import jax.numpy as jnp
from jax.experimental import pallas as pl
from jax.experimental.pallas import tpu as pltpu


def _round_up(x, m):
    return ((x + m - 1) // m) * m


def _fused_aspp_kernel(x_ref, w_ref, gamma_ref, beta_ref, mask_ref, o_ref,
                       p_ref, *,
                       N, Cin, Cin_p, KH, KW, dil, Wp, Ho, Wo, HoWp, eps):
    """One grid step = one batch element.

    x_ref:     (1, Cin, L)          zero-padded, flattened image (bf16, lane-dense)
    w_ref:     (Cout, KH*KW*Cin_p)  flattened conv weight (bf16), resident
    gamma_ref: (Cout, 1) f32        beta_ref: (Cout, 1) f32
    mask_ref:  (1, Ho*Wp) f32       1.0 on valid output columns, 0.0 on overcompute
    o_ref:     (N, Cout, Ho*Wp) f32 resident across the whole grid (BN needs the batch)
    p_ref:     (KH*KW*Cin_p, Ho*Wp) bf16 scratch -- wide im2col patch matrix
    """
    n = pl.program_id(0)

    # Zero only the Cin..Cin_p pad rows of each tap block, once.  The real
    # rows are fully overwritten every grid step; skip entirely if Cin % 8 == 0.
    if Cin_p > Cin:
        @pl.when(n == 0)
        def _zero_pad_rows():
            for t in range(KH * KW):
                r0 = t * Cin_p
                p_ref[r0 + Cin:r0 + Cin_p, :] = jnp.zeros(
                    (Cin_p - Cin, HoWp), p_ref.dtype)

    xn = x_ref[0]                                     # (Cin, L) bf16

    # Wide im2col: every (kh, kw) tap is ONE contiguous lane slice of the
    # flattened padded image -> one wide (Cin, Ho*Wp) store per tap.
    for kh in range(KH):
        for kw in range(KW):
            idx = kh * KW + kw
            s = (kh * dil) * Wp + kw * dil
            r0 = idx * Cin_p
            p_ref[r0:r0 + Cin, :] = xn[:, s:s + HoWp]

    # Single MXU matmul per batch element: bf16 x bf16 -> f32 accumulate.
    yw = jax.lax.dot_general(
        w_ref[...], p_ref[...],
        dimension_numbers=(((1,), (0,)), ((), ())),
        preferred_element_type=jnp.float32)           # (Cout, Ho*Wp) f32

    # One lane-dense store into the resident output block (no y_ref scratch).
    o_ref[n] = yw

    # BatchNorm (training-mode batch stats, two-pass variance) + ReLU, in f32.
    @pl.when(n == N - 1)
    def _finalize():
        y = o_ref[...]                                # (N, Cout, Ho*Wp)
        m = mask_ref[...]                             # (1, Ho*Wp)
        inv_cnt = 1.0 / float(N * Ho * Wo)

        s = jnp.zeros_like(gamma_ref[...])            # (Cout, 1)
        for i in range(N):
            s = s + jnp.sum(y[i] * m, axis=1, keepdims=True)
        mean = s * inv_cnt

        v = jnp.zeros_like(mean)
        for i in range(N):
            d = (y[i] - mean) * m
            v = v + jnp.sum(d * d, axis=1, keepdims=True)
        var = v * inv_cnt

        scale = gamma_ref[...] * jax.lax.rsqrt(var + eps)
        bias = beta_ref[...] - mean * scale
        for i in range(N):
            o_ref[i] = jnp.maximum(y[i] * scale + bias, 0.0)


def aspp_forward(x_nchw, w_oihw, gamma, beta, *, padding, dilation, eps=1e-5):
    """Forward of _ASPPModule (groups=1). Inputs NCHW / OIHW like PyTorch."""
    # TODO(synk): groups > 1 (the grouped dilated ASPP branches) not implemented.
    # TODO(synk): running_mean/var momentum updates (full BatchNorm2d training
    #             semantics) are not produced; forward activation only.
    N, Cin, H, W = x_nchw.shape
    Cout, _, KH, KW = w_oihw.shape

    Hp, Wp = H + 2 * padding, W + 2 * padding
    Ho = Hp - dilation * (KH - 1)
    Wo = Wp - dilation * (KW - 1)
    HoWp = Ho * Wp
    Cin_p = _round_up(Cin, 8)                 # sublane-aligned im2col row blocks
    K = KH * KW * Cin_p
    tail = (KW - 1) * dilation
    L = Hp * Wp + tail

    # Wrapper-side layout plumbing (cheap XLA ops): zero-pad + flatten so the
    # kernel sees a lane-dense (Cin, L) slab per batch element, in bf16.
    xpad = jnp.pad(x_nchw.astype(jnp.float32),
                   ((0, 0), (0, 0), (padding, padding), (padding, padding)))
    xflat = jnp.pad(xpad.reshape(N, Cin, Hp * Wp),
                    ((0, 0), (0, 0), (0, tail))).astype(jnp.bfloat16)

    # (Cout, Cin, KH, KW) -> (Cout, KH*KW*Cin_p), row order (kh, kw, cin).
    w_khwc = jnp.transpose(w_oihw.astype(jnp.float32),
                           (0, 2, 3, 1)).reshape(Cout, KH * KW, Cin)
    w_flat = jnp.zeros((Cout, KH * KW, Cin_p), jnp.float32)
    w_flat = w_flat.at[:, :, :Cin].set(w_khwc).reshape(Cout, K)
    w_flat = w_flat.astype(jnp.bfloat16)

    # Valid-column mask for the Wp - Wo overcompute columns.
    mask = jnp.tile((jnp.arange(Wp) < Wo).astype(jnp.float32), Ho)[None, :]

    kernel = functools.partial(
        _fused_aspp_kernel, N=N, Cin=Cin, Cin_p=Cin_p, KH=KH, KW=KW,
        dil=dilation, Wp=Wp, Ho=Ho, Wo=Wo, HoWp=HoWp, eps=eps)

    out_wide = pl.pallas_call(
        kernel,
        out_shape=jax.ShapeDtypeStruct((N, Cout, HoWp), jnp.float32),
        grid=(N,),
        in_specs=[
            pl.BlockSpec((1, Cin, L), lambda n: (n, 0, 0)),     # pipelined per-batch
            pl.BlockSpec((Cout, K), lambda n: (0, 0)),          # resident weight
            pl.BlockSpec((Cout, 1), lambda n: (0, 0)),
            pl.BlockSpec((Cout, 1), lambda n: (0, 0)),
            pl.BlockSpec((1, HoWp), lambda n: (0, 0)),
        ],
        # Constant index_map: output stays resident in VMEM across the batch
        # grid axis so the BN reduction/finalize can see all of it.
        out_specs=pl.BlockSpec((N, Cout, HoWp), lambda n: (0, 0, 0)),
        scratch_shapes=[
            pltpu.VMEM((K, HoWp), jnp.bfloat16),                # im2col patches
        ],
        compiler_params=pltpu.CompilerParams(
            dimension_semantics=("arbitrary",)),
    )(xflat, w_flat,
      gamma.reshape(Cout, 1).astype(jnp.float32),
      beta.reshape(Cout, 1).astype(jnp.float32),
      mask)

    # Drop the Wp-Wo overcompute columns (cheap strided slice in XLA).
    return out_wide.reshape(N, Cout, Ho, Wp)[:, :, :, :Wo]


# Pure-JAX reference (bf16-rounded conv operands, matching the kernel's MXU
# precision; accumulation and BN math in f32 on both sides).
def _reference(x_nchw, w_oihw, gamma, beta, *, padding, dilation, eps=1e-5):
    xb = x_nchw.astype(jnp.bfloat16).astype(jnp.float32)
    wb = w_oihw.astype(jnp.bfloat16).astype(jnp.float32)
    y = jax.lax.conv_general_dilated(
        xb, wb, window_strides=(1, 1),
        padding=((padding, padding), (padding, padding)),
        rhs_dilation=(dilation, dilation),
        dimension_numbers=("NCHW", "OIHW", "NCHW"))
    mean = jnp.mean(y, axis=(0, 2, 3), keepdims=True)
    var = jnp.mean((y - mean) ** 2, axis=(0, 2, 3), keepdims=True)
    yhat = (y - mean) * jax.lax.rsqrt(var + eps)
    out = yhat * gamma.reshape(1, -1, 1, 1) + beta.reshape(1, -1, 1, 1)
    return jnp.maximum(out, 0.0)


if __name__ == "__main__":
    # _ASPPModule(inplanes=4, planes=8, kernel_size=3, padding=2, dilation=2)
    inplanes, planes, ksize, padding, dilation = 4, 8, 3, 2, 2
    N, H, W = 2, 16, 16

    key = jax.random.PRNGKey(0)
    kx, kw = jax.random.split(key)

    x = jax.random.normal(kx, (N, inplanes, H, W), jnp.float32)

    # kaiming_normal_ (fan_in, gain=sqrt(2)) for the conv weight, OIHW.
    fan_in = inplanes * ksize * ksize
    w = jax.random.normal(kw, (planes, inplanes, ksize, ksize),
                          jnp.float32) * jnp.sqrt(2.0 / fan_in)
    # BatchNorm init: weight=1, bias=0.
    gamma = jnp.ones((planes,), jnp.float32)
    beta = jnp.zeros((planes,), jnp.float32)

    out = aspp_forward(x, w, gamma, beta, padding=padding, dilation=dilation)
    out = jax.block_until_ready(out)

    ref = _reference(x, w, gamma, beta, padding=padding, dilation=dilation)
    assert out.shape == ref.shape == (N, planes, H, W)
    assert jnp.allclose(out, ref, atol=1e-3, rtol=1e-3), \
        float(jnp.max(jnp.abs(out - ref)))

    print("KERNEL_OK")
</pallas_src>

<mosaic_0001>
module attributes {stable_mosaic.version = 11 : i64} {
  func.func @_fused_aspp_kernel(%arg0: i32, %arg1: memref<1x4x404xbf16, #tpu.memory_space<vmem>>, %arg2: memref<8x72xbf16, #tpu.memory_space<vmem>>, %arg3: memref<8x1xf32, #tpu.memory_space<vmem>>, %arg4: memref<8x1xf32, #tpu.memory_space<vmem>>, %arg5: memref<1x320xf32, #tpu.memory_space<vmem>>, %arg6: memref<2x8x320xf32, #tpu.memory_space<vmem>>, %arg7: memref<72x320xbf16, #tpu.memory_space<vmem>>) attributes {dimension_semantics = [#tpu.dimension_semantics<arbitrary>], iteration_bounds = array<i64: 2>, scalar_prefetch = 0 : i64, scratch_operands = 1 : i64, tpu.core_type = #tpu.core_type<tc>, window_params = [{transform_indices = @transform_0, window_bounds = array<i64: 1, 4, 404>}, {pipeline_mode = #tpu.pipeline_mode<synchronous>, transform_indices = @transform_1, window_bounds = array<i64: 8, 72>}, {pipeline_mode = #tpu.pipeline_mode<synchronous>, transform_indices = @transform_2, window_bounds = array<i64: 8, 1>}, {pipeline_mode = #tpu.pipeline_mode<synchronous>, transform_indices = @transform_3, window_bounds = array<i64: 8, 1>}, {pipeline_mode = #tpu.pipeline_mode<synchronous>, transform_indices = @transform_4, window_bounds = array<i64: 1, 320>}, {pipeline_mode = #tpu.pipeline_mode<synchronous>, transform_indices = @transform_5, window_bounds = array<i64: 2, 8, 320>}]} {
    %c0_i32 = arith.constant 0 : i32
    %0 = arith.cmpi eq, %arg0, %c0_i32 : i32
    %1 = arith.extui %0 : i1 to i32
    %c0_i32_0 = arith.constant 0 : i32
    %2 = arith.cmpi ne, %1, %c0_i32_0 : i32
    scf.if %2 {
      %cst_20 = arith.constant 0.000000e+00 : bf16
      %33 = vector.broadcast %cst_20 : bf16 to vector<4x320xbf16>
      %c4 = arith.constant 4 : index
      %c0_21 = arith.constant 0 : index
      %34 = vector.load %arg7[%c4, %c0_21] : memref<72x320xbf16, #tpu.memory_space<vmem>>, vector<4x320xbf16>
      tpu.vector_store %arg7[%c4, %c0_21], %33 {strides = array<i32>} : memref<72x320xbf16, #tpu.memory_space<vmem>>, vector<4x320xbf16>,
      %cst_22 = arith.constant 0.000000e+00 : bf16
      %35 = vector.broadcast %cst_22 : bf16 to vector<4x320xbf16>
      %c12 = arith.constant 12 : index
      %c0_23 = arith.constant 0 : index
      %36 = vector.load %arg7[%c12, %c0_23] : memref<72x320xbf16, #tpu.memory_space<vmem>>, vector<4x320xbf16>
      tpu.vector_store %arg7[%c12, %c0_23], %35 {strides = array<i32>} : memref<72x320xbf16, #tpu.memory_space<vmem>>, vector<4x320xbf16>,
      %cst_24 = arith.constant 0.000000e+00 : bf16
      %37 = vector.broadcast %cst_24 : bf16 to vector<4x320xbf16>
      %c20 = arith.constant 20 : index
      %c0_25 = arith.constant 0 : index
      %38 = vector.load %arg7[%c20, %c0_25] : memref<72x320xbf16, #tpu.memory_space<vmem>>, vector<4x320xbf16>
      tpu.vector_store %arg7[%c20, %c0_25], %37 {strides = array<i32>} : memref<72x320xbf16, #tpu.memory_space<vmem>>, vector<4x320xbf16>,
      %cst_26 = arith.constant 0.000000e+00 : bf16
      %39 = vector.broadcast %cst_26 : bf16 to vector<4x320xbf16>
      %c28 = arith.constant 28 : index
      %c0_27 = arith.constant 0 : index
      %40 = vector.load %arg7[%c28, %c0_27] : memref<72x320xbf16, #tpu.memory_space<vmem>>, vector<4x320xbf16>
      tpu.vector_store %arg7[%c28, %c0_27], %39 {strides = array<i32>} : memref<72x320xbf16, #tpu.memory_space<vmem>>, vector<4x320xbf16>,
      %cst_28 = arith.constant 0.000000e+00 : bf16
      %41 = vector.broadcast %cst_28 : bf16 to vector<4x320xbf16>
      %c36 = arith.constant 36 : index
      %c0_29 = arith.constant 0 : index
      %42 = vector.load %arg7[%c36, %c0_29] : memref<72x320xbf16, #tpu.memory_space<vmem>>, vector<4x320xbf16>
      tpu.vector_store %arg7[%c36, %c0_29], %41 {strides = array<i32>} : memref<72x320xbf16, #tpu.memory_space<vmem>>, vector<4x320xbf16>,
      %cst_30 = arith.constant 0.000000e+00 : bf16
      %43 = vector.broadcast %cst_30 : bf16 to vector<4x320xbf16>
      %c44 = arith.constant 44 : index
      %c0_31 = arith.constant 0 : index
      %44 = vector.load %arg7[%c44, %c0_31] : memref<72x320xbf16, #tpu.memory_space<vmem>>, vector<4x320xbf16>
      tpu.vector_store %arg7[%c44, %c0_31], %43 {strides = array<i32>} : memref<72x320xbf16, #tpu.memory_space<vmem>>, vector<4x320xbf16>,
      %cst_32 = arith.constant 0.000000e+00 : bf16
      %45 = vector.broadcast %cst_32 : bf16 to vector<4x320xbf16>
      %c52 = arith.constant 52 : index
      %c0_33 = arith.constant 0 : index
      %46 = vector.load %arg7[%c52, %c0_33] : memref<72x320xbf16, #tpu.memory_space<vmem>>, vector<4x320xbf16>
      tpu.vector_store %arg7[%c52, %c0_33], %45 {strides = array<i32>} : memref<72x320xbf16, #tpu.memory_space<vmem>>, vector<4x320xbf16>,
      %cst_34 = arith.constant 0.000000e+00 : bf16
      %47 = vector.broadcast %cst_34 : bf16 to vector<4x320xbf16>
      %c60 = arith.constant 60 : index
      %c0_35 = arith.constant 0 : index
      %48 = vector.load %arg7[%c60, %c0_35] : memref<72x320xbf16, #tpu.memory_space<vmem>>, vector<4x320xbf16>
      tpu.vector_store %arg7[%c60, %c0_35], %47 {strides = array<i32>} : memref<72x320xbf16, #tpu.memory_space<vmem>>, vector<4x320xbf16>,
      %cst_36 = arith.constant 0.000000e+00 : bf16
      %49 = vector.broadcast %cst_36 : bf16 to vector<4x320xbf16>
      %c68 = arith.constant 68 : index
      %c0_37 = arith.constant 0 : index
      %50 = vector.load %arg7[%c68, %c0_37] : memref<72x320xbf16, #tpu.memory_space<vmem>>, vector<4x320xbf16>
      tpu.vector_store %arg7[%c68, %c0_37], %49 {strides = array<i32>} : memref<72x320xbf16, #tpu.memory_space<vmem>>, vector<4x320xbf16>,
    } else {
    }
    %c0 = arith.constant 0 : index
    %c0_1 = arith.constant 0 : index
    %c0_2 = arith.constant 0 : index
    %3 = vector.load %arg1[%c0, %c0_1, %c0_2] : memref<1x4x404xbf16, #tpu.memory_space<vmem>>, vector<1x4x404xbf16>
    %4 = vector.shape_cast %3 : vector<1x4x404xbf16> to vector<4x404xbf16>
    %5 = vector.extract_strided_slice %4 {offsets = [0, 0], sizes = [4, 320], strides = [1, 1]} : vector<4x404xbf16> to vector<4x320xbf16>
    %c0_3 = arith.constant 0 : index
    %c0_4 = arith.constant 0 : index
    %6 = vector.load %arg7[%c0_3, %c0_4] : memref<72x320xbf16, #tpu.memory_space<vmem>>, vector<4x320xbf16>
    tpu.vector_store %arg7[%c0_3, %c0_4], %5 {strides = array<i32>} : memref<72x320xbf16, #tpu.memory_space<vmem>>, vector<4x320xbf16>,
    %7 = vector.extract_strided_slice %4 {offsets = [0, 2], sizes = [4, 320], strides = [1, 1]} : vector<4x404xbf16> to vector<4x320xbf16>
    %c8 = arith.constant 8 : index
    %c0_5 = arith.constant 0 : index
    %8 = vector.load %arg7[%c8, %c0_5] : memref<72x320xbf16, #tpu.memory_space<vmem>>, vector<4x320xbf16>
    tpu.vector_store %arg7[%c8, %c0_5], %7 {strides = array<i32>} : memref<72x320xbf16, #tpu.memory_space<vmem>>, vector<4x320xbf16>,
    %9 = vector.extract_strided_slice %4 {offsets = [0, 4], sizes = [4, 320], strides = [1, 1]} : vector<4x404xbf16> to vector<4x320xbf16>
    %c16 = arith.constant 16 : index
    %c0_6 = arith.constant 0 : index
    %10 = vector.load %arg7[%c16, %c0_6] : memref<72x320xbf16, #tpu.memory_space<vmem>>, vector<4x320xbf16>
    tpu.vector_store %arg7[%c16, %c0_6], %9 {strides = array<i32>} : memref<72x320xbf16, #tpu.memory_space<vmem>>, vector<4x320xbf16>,
    %11 = vector.extract_strided_slice %4 {offsets = [0, 40], sizes = [4, 320], strides = [1, 1]} : vector<4x404xbf16> to vector<4x320xbf16>
    %c24 = arith.constant 24 : index
    %c0_7 = arith.constant 0 : index
    %12 = vector.load %arg7[%c24, %c0_7] : memref<72x320xbf16, #tpu.memory_space<vmem>>, vector<4x320xbf16>
    tpu.vector_store %arg7[%c24, %c0_7], %11 {strides = array<i32>} : memref<72x320xbf16, #tpu.memory_space<vmem>>, vector<4x320xbf16>,
    %13 = vector.extract_strided_slice %4 {offsets = [0, 42], sizes = [4, 320], strides = [1, 1]} : vector<4x404xbf16> to vector<4x320xbf16>
    %c32 = arith.constant 32 : index
    %c0_8 = arith.constant 0 : index
    %14 = vector.load %arg7[%c32, %c0_8] : memref<72x320xbf16, #tpu.memory_space<vmem>>, vector<4x320xbf16>
    tpu.vector_store %arg7[%c32, %c0_8], %13 {strides = array<i32>} : memref<72x320xbf16, #tpu.memory_space<vmem>>, vector<4x320xbf16>,
    %15 = vector.extract_strided_slice %4 {offsets = [0, 44], sizes = [4, 320], strides = [1, 1]} : vector<4x404xbf16> to vector<4x320xbf16>
    %c40 = arith.constant 40 : index
    %c0_9 = arith.constant 0 : index
    %16 = vector.load %arg7[%c40, %c0_9] : memref<72x320xbf16, #tpu.memory_space<vmem>>, vector<4x320xbf16>
    tpu.vector_store %arg7[%c40, %c0_9], %15 {strides = array<i32>} : memref<72x320xbf16, #tpu.memory_space<vmem>>, vector<4x320xbf16>,
    %17 = vector.extract_strided_slice %4 {offsets = [0, 80], sizes = [4, 320], strides = [1, 1]} : vector<4x404xbf16> to vector<4x320xbf16>
    %c48 = arith.constant 48 : index
    %c0_10 = arith.constant 0 : index
    %18 = vector.load %arg7[%c48, %c0_10] : memref<72x320xbf16, #tpu.memory_space<vmem>>, vector<4x320xbf16>
    tpu.vector_store %arg7[%c48, %c0_10], %17 {strides = array<i32>} : memref<72x320xbf16, #tpu.memory_space<vmem>>, vector<4x320xbf16>,
    %19 = vector.extract_strided_slice %4 {offsets = [0, 82], sizes = [4, 320], strides = [1, 1]} : vector<4x404xbf16> to vector<4x320xbf16>
    %c56 = arith.constant 56 : index
    %c0_11 = arith.constant 0 : index
    %20 = vector.load %arg7[%c56, %c0_11] : memref<72x320xbf16, #tpu.memory_space<vmem>>, vector<4x320xbf16>
    tpu.vector_store %arg7[%c56, %c0_11], %19 {strides = array<i32>} : memref<72x320xbf16, #tpu.memory_space<vmem>>, vector<4x320xbf16>,
    %21 = vector.extract_strided_slice %4 {offsets = [0, 84], sizes = [4, 320], strides = [1, 1]} : vector<4x404xbf16> to vector<4x320xbf16>
    %c64 = arith.constant 64 : index
    %c0_12 = arith.constant 0 : index
    %22 = vector.load %arg7[%c64, %c0_12] : memref<72x320xbf16, #tpu.memory_space<vmem>>, vector<4x320xbf16>
    tpu.vector_store %arg7[%c64, %c0_12], %21 {strides = array<i32>} : memref<72x320xbf16, #tpu.memory_space<vmem>>, vector<4x320xbf16>,
    %c0_13 = arith.constant 0 : index
    %c0_14 = arith.constant 0 : index
    %23 = vector.load %arg2[%c0_13, %c0_14] : memref<8x72xbf16, #tpu.memory_space<vmem>>, vector<8x72xbf16>
    %c0_15 = arith.constant 0 : index
    %c0_16 = arith.constant 0 : index
    %24 = vector.load %arg7[%c0_15, %c0_16] : memref<72x320xbf16, #tpu.memory_space<vmem>>, vector<72x320xbf16>
    %cst = arith.constant dense<0.000000e+00> : vector<8x320xf32>
    %25 = tpu.matmul %23, %24, %cst {dimension_numbers = #tpu.dot_dimension_numbers<[1], [0], [0], [1], [0, 0, 1, 1], [], []>} : vector<8x72xbf16>, vector<72x320xbf16>, vector<8x320xf32> -> vector<8x320xf32>
    %26 = arith.index_cast %arg0 : i32 to index
    %c0_17 = arith.constant 0 : index
    %c0_18 = arith.constant 0 : index
    %27 = vector.load %arg6[%26, %c0_17, %c0_18] : memref<2x8x320xf32, #tpu.memory_space<vmem>>, vector<1x8x320xf32>
    %28 = vector.shape_cast %27 : vector<1x8x320xf32> to vector<8x320xf32>
    %29 = vector.shape_cast %25 : vector<8x320xf32> to vector<1x8x320xf32>
    tpu.vector_store %arg6[%26, %c0_17, %c0_18], %29 {strides = array<i32>} : memref<2x8x320xf32, #tpu.memory_space<vmem>>, vector<1x8x320xf32>,
    %c1_i32 = arith.constant 1 : i32
    %30 = arith.cmpi eq, %arg0, %c1_i32 : i32
    %31 = arith.extui %30 : i1 to i32
    %c0_i32_19 = arith.constant 0 : i32
    %32 = arith.cmpi ne, %31, %c0_i32_19 : i32
    scf.if %32 {
      %c0_20 = arith.constant 0 : index
      %c0_21 = arith.constant 0 : index
      %c0_22 = arith.constant 0 : index
      %33 = vector.load %arg6[%c0_20, %c0_21, %c0_22] : memref<2x8x320xf32, #tpu.memory_space<vmem>>, vector<2x8x320xf32>
      %c0_23 = arith.constant 0 : index
      %c0_24 = arith.constant 0 : index
      %34 = vector.load %arg5[%c0_23, %c0_24] : memref<1x320xf32, #tpu.memory_space<vmem>>, vector<1x320xf32>
      %cst_25 = arith.constant 0.000000e+00 : f32
      %35 = vector.broadcast %cst_25 : f32 to vector<8x1xf32>
      %36 = vector.extract_strided_slice %33 {offsets = [0, 0, 0], sizes = [1, 8, 320], strides = [1, 1, 1]} : vector<2x8x320xf32> to vector<1x8x320xf32>
      %37 = vector.shape_cast %36 : vector<1x8x320xf32> to vector<8x320xf32>
      %38 = vector.broadcast %34 : vector<1x320xf32> to vector<8x320xf32>
      %39 = arith.mulf %37, %38 : vector<8x320xf32>
      %cst_26 = arith.constant dense<0.000000e+00> : vector<8xf32>
      %40 = vector.multi_reduction <add>, %39, %cst_26 [1] : vector<8x320xf32> to vector<8xf32>
      %41 = vector.shape_cast %40 : vector<8xf32> to vector<8x1xf32>
      %42 = arith.addf %35, %41 : vector<8x1xf32>
      %43 = vector.extract_strided_slice %33 {offsets = [1, 0, 0], sizes = [1, 8, 320], strides = [1, 1, 1]} : vector<2x8x320xf32> to vector<1x8x320xf32>
      %44 = vector.shape_cast %43 : vector<1x8x320xf32> to vector<8x320xf32>
      %45 = vector.broadcast %34 : vector<1x320xf32> to vector<8x320xf32>
      %46 = arith.mulf %44, %45 : vector<8x320xf32>
      %cst_27 = arith.constant dense<0.000000e+00> : vector<8xf32>
      %47 = vector.multi_reduction <add>, %46, %cst_27 [1] : vector<8x320xf32> to vector<8xf32>
      %48 = vector.shape_cast %47 : vector<8xf32> to vector<8x1xf32>
      %49 = arith.addf %42, %48 : vector<8x1xf32>
      %cst_28 = arith.constant 0.001953125 : f32
      %50 = vector.broadcast %cst_28 : f32 to vector<8x1xf32>
      %51 = arith.mulf %49, %50 : vector<8x1xf32>
      %cst_29 = arith.constant 0.000000e+00 : f32
      %52 = vector.broadcast %cst_29 : f32 to vector<8x1xf32>
      %53 = vector.extract_strided_slice %33 {offsets = [0, 0, 0], sizes = [1, 8, 320], strides = [1, 1, 1]} : vector<2x8x320xf32> to vector<1x8x320xf32>
      %54 = vector.shape_cast %53 : vector<1x8x320xf32> to vector<8x320xf32>
      %55 = vector.broadcast %51 : vector<8x1xf32> to vector<8x320xf32>
      %56 = arith.subf %54, %55 : vector<8x320xf32>
      %57 = vector.broadcast %34 : vector<1x320xf32> to vector<8x320xf32>
      %58 = arith.mulf %56, %57 : vector<8x320xf32>
      %59 = arith.mulf %58, %58 : vector<8x320xf32>
      %cst_30 = arith.constant dense<0.000000e+00> : vector<8xf32>
      %60 = vector.multi_reduction <add>, %59, %cst_30 [1] : vector<8x320xf32> to vector<8xf32>
      %61 = vector.shape_cast %60 : vector<8xf32> to vector<8x1xf32>
      %62 = arith.addf %52, %61 : vector<8x1xf32>
      %63 = vector.extract_strided_slice %33 {offsets = [1, 0, 0], sizes = [1, 8, 320], strides = [1, 1, 1]} : vector<2x8x320xf32> to vector<1x8x320xf32>
      %64 = vector.shape_cast %63 : vector<1x8x320xf32> to vector<8x320xf32>
      %65 = vector.broadcast %51 : vector<8x1xf32> to vector<8x320xf32>
      %66 = arith.subf %64, %65 : vector<8x320xf32>
      %67 = vector.broadcast %34 : vector<1x320xf32> to vector<8x320xf32>
      %68 = arith.mulf %66, %67 : vector<8x320xf32>
      %69 = arith.mulf %68, %68 : vector<8x320xf32>
      %cst_31 = arith.constant dense<0.000000e+00> : vector<8xf32>
      %70 = vector.multi_reduction <add>, %69, %cst_31 [1] : vector<8x320xf32> to vector<8xf32>
      %71 = vector.shape_cast %70 : vector<8xf32> to vector<8x1xf32>
      %72 = arith.addf %62, %71 : vector<8x1xf32>
      %cst_32 = arith.constant 0.001953125 : f32
      %73 = vector.broadcast %cst_32 : f32 to vector<8x1xf32>
      %74 = arith.mulf %72, %73 : vector<8x1xf32>
      %c0_33 = arith.constant 0 : index
      %c0_34 = arith.constant 0 : index
      %75 = vector.load %arg3[%c0_33, %c0_34] : memref<8x1xf32, #tpu.memory_space<vmem>>, vector<8x1xf32>
      %cst_35 = arith.constant 9.99999974E-6 : f32
      %76 = vector.broadcast %cst_35 : f32 to vector<8x1xf32>
      %77 = arith.addf %74, %76 : vector<8x1xf32>
      %78 = math.rsqrt %77 : vector<8x1xf32>
      %79 = arith.mulf %75, %78 : vector<8x1xf32>
      %c0_36 = arith.constant 0 : index
      %c0_37 = arith.constant 0 : index
      %80 = vector.load %arg4[%c0_36, %c0_37] : memref<8x1xf32, #tpu.memory_space<vmem>>, vector<8x1xf32>
      %81 = arith.mulf %51, %79 : vector<8x1xf32>
      %82 = arith.subf %80, %81 : vector<8x1xf32>
      %83 = vector.extract_strided_slice %33 {offsets = [0, 0, 0], sizes = [1, 8, 320], strides = [1, 1, 1]} : vector<2x8x320xf32> to vector<1x8x320xf32>
      %84 = vector.shape_cast %83 : vector<1x8x320xf32> to vector<8x320xf32>
      %85 = vector.broadcast %79 : vector<8x1xf32> to vector<8x320xf32>
      %86 = arith.mulf %84, %85 : vector<8x320xf32>
      %87 = vector.broadcast %82 : vector<8x1xf32> to vector<8x320xf32>
      %88 = arith.addf %86, %87 : vector<8x320xf32>
      %cst_38 = arith.constant 0.000000e+00 : f32
      %89 = vector.broadcast %cst_38 : f32 to vector<8x320xf32>
      %90 = arith.maximumf %88, %89 : vector<8x320xf32>
      %c0_39 = arith.constant 0 : index
      %c0_40 = arith.constant 0 : index
      %c0_41 = arith.constant 0 : index
      %91 = vector.load %arg6[%c0_39, %c0_40, %c0_41] : memref<2x8x320xf32, #tpu.memory_space<vmem>>, vector<1x8x320xf32>
      %92 = vector.shape_cast %91 : vector<1x8x320xf32> to vector<8x320xf32>
      %93 = vector.shape_cast %90 : vector<8x320xf32> to vector<1x8x320xf32>
      tpu.vector_store %arg6[%c0_39, %c0_40, %c0_41], %93 {strides = array<i32>} : memref<2x8x320xf32, #tpu.memory_space<vmem>>, vector<1x8x320xf32>,
      %94 = vector.extract_strided_slice %33 {offsets = [1, 0, 0], sizes = [1, 8, 320], strides = [1, 1, 1]} : vector<2x8x320xf32> to vector<1x8x320xf32>
      %95 = vector.shape_cast %94 : vector<1x8x320xf32> to vector<8x320xf32>
      %96 = vector.broadcast %79 : vector<8x1xf32> to vector<8x320xf32>
      %97 = arith.mulf %95, %96 : vector<8x320xf32>
      %98 = vector.broadcast %82 : vector<8x1xf32> to vector<8x320xf32>
      %99 = arith.addf %97, %98 : vector<8x320xf32>
      %cst_42 = arith.constant 0.000000e+00 : f32
      %100 = vector.broadcast %cst_42 : f32 to vector<8x320xf32>
      %101 = arith.maximumf %99, %100 : vector<8x320xf32>
      %c1 = arith.constant 1 : index
      %c0_43 = arith.constant 0 : index
      %c0_44 = arith.constant 0 : index
      %102 = vector.load %arg6[%c1, %c0_43, %c0_44] : memref<2x8x320xf32, #tpu.memory_space<vmem>>, vector<1x8x320xf32>
      %103 = vector.shape_cast %102 : vector<1x8x320xf32> to vector<8x320xf32>
      %104 = vector.shape_cast %101 : vector<8x320xf32> to vector<1x8x320xf32>
      tpu.vector_store %arg6[%c1, %c0_43, %c0_44], %104 {strides = array<i32>} : memref<2x8x320xf32, #tpu.memory_space<vmem>>, vector<1x8x320xf32>,
    } else {
    }
    return
  }
  func.func @transform_0(%arg0: i32) -> (i32, i32, i32) {
    %c0_i32 = arith.constant 0 : i32
    %c0_i32_0 = arith.constant 0 : i32
    %c0_i32_1 = arith.constant 0 : i32
    return %arg0, %c0_i32, %c0_i32_0 : i32, i32, i32
  }
  func.func @transform_1(%arg0: i32) -> (i32, i32) {
    %c0_i32 = arith.constant 0 : i32
    %c0_i32_0 = arith.constant 0 : i32
    %c0_i32_1 = arith.constant 0 : i32
    return %c0_i32, %c0_i32_0 : i32, i32
  }
  func.func @transform_2(%arg0: i32) -> (i32, i32) {
    %c0_i32 = arith.constant 0 : i32
    %c0_i32_0 = arith.constant 0 : i32
    %c0_i32_1 = arith.constant 0 : i32
    return %c0_i32, %c0_i32_0 : i32, i32
  }
  func.func @transform_3(%arg0: i32) -> (i32, i32) {
    %c0_i32 = arith.constant 0 : i32
    %c0_i32_0 = arith.constant 0 : i32
    %c0_i32_1 = arith.constant 0 : i32
    return %c0_i32, %c0_i32_0 : i32, i32
  }
  func.func @transform_4(%arg0: i32) -> (i32, i32) {
    %c0_i32 = arith.constant 0 : i32
    %c0_i32_0 = arith.constant 0 : i32
    %c0_i32_1 = arith.constant 0 : i32
    return %c0_i32, %c0_i32_0 : i32, i32
  }
  func.func @transform_5(%arg0: i32) -> (i32, i32, i32) {
    %c0_i32 = arith.constant 0 : i32
    %c0_i32_0 = arith.constant 0 : i32
    %c0_i32_1 = arith.constant 0 : i32
    %c0_i32_2 = arith.constant 0 : i32
    return %c0_i32, %c0_i32_0, %c0_i32_1 : i32, i32, i32
  }
}

</mosaic_0001>

<llo_original>
// kernel: tpu_custom_call.1
$region0: #{tpu_custom_call.1}
  #allocation0 [shape = 'u32[]', space=smem, size = 0x4, offset = 0x4, fixed_abs, tag = 'smem constant byte address 0x4 - core index']
  #allocation1 [shape = 'u32[144,128]{1,0:T(1,128)}', space=vmem, size = 0x12000, scoped, tag = 'internal scratch']
  #allocation2 [shape = 'bf16[72,320]{1,0:T(8,128)(2,1)}', space=vmem, size = 0xd800, scoped, tag = 'scratch operand']
  %s0 = inlined_call_operand.vmem [shape: bf16[2,4,404], index: 0, kind: input, shape index: {}]
  %s1 = inlined_call_operand.vmem [shape: bf16[8,72], index: 1, kind: input, shape index: {}]
  %s2 = inlined_call_operand.vmem [shape: f32[8,1], index: 2, kind: input, shape index: {}]
  %s3 = inlined_call_operand.vmem [shape: f32[8,1], index: 3, kind: input, shape index: {}]
  %s4 = inlined_call_operand.vmem [shape: f32[1,320], index: 4, kind: input, shape index: {}]
  %s5 = inlined_call_operand.hbm [shape: f32[2,8,320], index: 5, kind: output, shape index: {}]
  %s6 = sld [smem:[#allocation0]]
  $region61: #{tpu_custom_call.1} parent=0
    _
  %s8 = ssub.s32 1, %s6
  %s9 = scalar_select 0, %s8, %s6
  $region1: #{tpu_custom_call.1} parent=0
    #allocation3 [shape = 'u8[24576]{0}', space=vmem, size = 0x6000, scoped, tag = 'output window, operand 0, single buffered']
    #allocation4 [shape = 's32[2]{0}', space=sflag, size = 0x8, scoped, tag = 'scoped memory for tpu_custom_call.1']
    %10 = vsyncpa [#allocation4], 0
    loop: start=0, step=1, limit=4
    $region2: #{tpu_custom_call.1} parent=1 // loop_pre_header
      _
    $region3: #{tpu_custom_call.1} parent=1 // loop_header
      %s12 = sphi 0, %s16
      %p13 = scmp.ge.s32.totalorder %s12, 4
      %s22 = sphi 0, %s24
      %s25 = sphi 0, %s22
      %s26 = sphi 0, %s25
      %s42 = sphi 0, %s26
      %s46 = sphi 0, %s46
      %s48 = sphi 0, %s46
      %s49 = sphi 0, %s48
      %s63 = sphi 0, %s49
      %s67 = sphi 0, %s67
      %s69 = sphi 0, %s67
      %s70 = sphi 0, %s69
      %s84 = sphi 0, %s70
      %s88 = sphi 0, %s88
      %s90 = sphi 0, %s88
      %s91 = sphi 0, %s90
      %s105 = sphi 0, %s91
      %s109 = sphi 0, %s109
      %s111 = sphi 0, %s109
      %s112 = sphi 0, %s111
      %s126 = sphi 0, %s112
      %s130 = sphi 0, %s130
      %s132 = sphi 0, %s130
      %s133 = sphi 0, %s132
      %s147 = sphi 0, %s133
    $region4: #{tpu_custom_call.1} parent=1 // loop_header_branch
      %15 = sbr.rel (%p13) target = $region8
    $region5: #{tpu_custom_call.1} parent=1 // loop_body
      %s17 = ssub.s32 %s12, 1
      %s18 = ssub.s32 %s12, 2
      %s19 = sadd.s32 %s12, 1
      %s20 = ssub.s32 %s12, %s19
      %p21 = scmp.eq.s32.totalorder %s20, 0
      %s23 = sadd.s32 %s22, 1
      %s24 = scalar_select %p21, %s22, %s23
      %p27 = pneg %p21
      %p28 = scmp.eq.s32.totalorder %s12, 1
      %p29 = por %p27, %p28
      %p30 = scmp.ne.s32.totalorder %s22, %s25
      %p31 = scmp.eq.s32.totalorder %s12, 0
      %p32 = por %p30, %p31
      %p33 = scmp.ne.s32.totalorder %s22, %s25
      %p34 = scmp.eq.s32.totalorder %s17, 1
      %p35 = por %p33, %p34
      %p36 = scmp.ne.s32.totalorder %s25, %s26
      %p37 = scmp.eq.s32.totalorder %s17, 0
      %p38 = por %p36, %p37
      %p39 = scmp.ne.s32.totalorder %s25, %s26
      %p40 = scmp.eq.s32.totalorder %s18, 1
      %p41 = por %p39, %p40
      %p43 = scmp.ne.s32.totalorder %s26, %s42
      %p44 = scmp.eq.s32.totalorder %s18, 0
      %p45 = por %p43, %p44
      %s47 = sadd.s32 %s46, 1
      %p50 = scmp.eq.s32.totalorder %s12, 1
      %p51 = scmp.ne.s32.totalorder %s46, %s48
      %p52 = scmp.eq.s32.totalorder %s12, 0
      %p53 = por %p51, %p52
      %p54 = scmp.ne.s32.totalorder %s46, %s48
      %p55 = scmp.eq.s32.totalorder %s17, 1
      %p56 = por %p54, %p55
      %p57 = scmp.ne.s32.totalorder %s48, %s49
      %p58 = scmp.eq.s32.totalorder %s17, 0
      %p59 = por %p57, %p58
      %p60 = scmp.ne.s32.totalorder %s48, %s49
      %p61 = scmp.eq.s32.totalorder %s18, 1
      %p62 = por %p60, %p61
      %p64 = scmp.ne.s32.totalorder %s49, %s63
      %p65 = scmp.eq.s32.totalorder %s18, 0
      %p66 = por %p64, %p65
      %s68 = sadd.s32 %s67, 1
      %p71 = scmp.eq.s32.totalorder %s12, 1
      %p72 = scmp.ne.s32.totalorder %s67, %s69
      %p73 = scmp.eq.s32.totalorder %s12, 0
      %p74 = por %p72, %p73
      %p75 = scmp.ne.s32.totalorder %s67, %s69
      %p76 = scmp.eq.s32.totalorder %s17, 1
      %p77 = por %p75, %p76
      %p78 = scmp.ne.s32.totalorder %s69, %s70
      %p79 = scmp.eq.s32.totalorder %s17, 0
      %p80 = por %p78, %p79
      %p81 = scmp.ne.s32.totalorder %s69, %s70
      %p82 = scmp.eq.s32.totalorder %s18, 1
      %p83 = por %p81, %p82
      %p85 = scmp.ne.s32.totalorder %s70, %s84
      %p86 = scmp.eq.s32.totalorder %s18, 0
      %p87 = por %p85, %p86
      %s89 = sadd.s32 %s88, 1
      %p92 = scmp.eq.s32.totalorder %s12, 1
      %p93 = scmp.ne.s32.totalorder %s88, %s90
      %p94 = scmp.eq.s32.totalorder %s12, 0
      %p95 = por %p93, %p94
      %p96 = scmp.ne.s32.totalorder %s88, %s90
      %p97 = scmp.eq.s32.totalorder %s17, 1
      %p98 = por %p96, %p97
      %p99 = scmp.ne.s32.totalorder %s90, %s91
      %p100 = scmp.eq.s32.totalorder %s17, 0
      %p101 = por %p99, %p100
      %p102 = scmp.ne.s32.totalorder %s90, %s91
      %p103 = scmp.eq.s32.totalorder %s18, 1
      %p104 = por %p102, %p103
      %p106 = scmp.ne.s32.totalorder %s91, %s105
      %p107 = scmp.eq.s32.totalorder %s18, 0
      %p108 = por %p106, %p107
      %s110 = sadd.s32 %s109, 1
      %p113 = scmp.eq.s32.totalorder %s12, 1
      %p114 = scmp.ne.s32.totalorder %s109, %s111
      %p115 = scmp.eq.s32.totalorder %s12, 0
      %p116 = por %p114, %p115
      %p117 = scmp.ne.s32.totalorder %s109, %s111
      %p118 = scmp.eq.s32.totalorder %s17, 1
      %p119 = por %p117, %p118
      %p120 = scmp.ne.s32.totalorder %s111, %s112
      %p121 = scmp.eq.s32.totalorder %s17, 0
      %p122 = por %p120, %p121
      %p123 = scmp.ne.s32.totalorder %s111, %s112
      %p124 = scmp.eq.s32.totalorder %s18, 1
      %p125 = por %p123, %p124
      %p127 = scmp.ne.s32.totalorder %s112, %s126
      %p128 = scmp.eq.s32.totalorder %s18, 0
      %p129 = por %p127, %p128
      %s131 = sadd.s32 %s130, 1
      %p134 = scmp.eq.s32.totalorder %s12, 1
      %p135 = scmp.ne.s32.totalorder %s130, %s132
      %p136 = scmp.eq.s32.totalorder %s12, 0
      %p137 = por %p135, %p136
      %p138 = scmp.ne.s32.totalorder %s130, %s132
      %p139 = scmp.eq.s32.totalorder %s17, 1
      %p140 = por %p138, %p139
      %p141 = scmp.ne.s32.totalorder %s132, %s133
      %p142 = scmp.eq.s32.totalorder %s17, 0
      %p143 = por %p141, %p142
      %p144 = scmp.ne.s32.totalorder %s132, %s133
      %p145 = scmp.eq.s32.totalorder %s18, 1
      %p146 = por %p144, %p145
      %p148 = scmp.ne.s32.totalorder %s133, %s147
      %p149 = scmp.eq.s32.totalorder %s18, 0
      %p150 = por %p148, %p149
      %p151 = scmp.le.s32.totalorder 1, %s12
      %p152 = scmp.lt.s32.totalorder %s12, 3
      %p153 = pnand %p151, %p152
      %p154 = pneg %p153
      // Predicated region
      $region9: #{tpu_custom_call.1} parent=5 // pred_check
        _
      $region10: #{tpu_custom_call.1} parent=5 // pred_check_branch
        %156 = sbr.rel (%p153) target = $region12
      $region11: #{tpu_custom_call.1} parent=5 // pred_region
        %s157 = ssub.s32 %s12, 1
        // Predicated region
        $region13: #{tpu_custom_call.1} parent=11 // pred_check
          %p158 = pneg %p59
        $region14: #{tpu_custom_call.1} parent=11 // pred_check_branch
          %160 = sbr.rel (%p158) target = $region16
        $region15: #{tpu_custom_call.1} parent=11 // pred_region
          _
        $region16: #{tpu_custom_call.1} parent=11 // pred_fallthru
          _
        // Predicated region
        $region17: #{tpu_custom_call.1} parent=11 // pred_check
          %p161 = pneg %p80
        $region18: #{tpu_custom_call.1} parent=11 // pred_check_branch
          %163 = sbr.rel (%p161) target = $region20
        $region19: #{tpu_custom_call.1} parent=11 // pred_region
          _
        $region20: #{tpu_custom_call.1} parent=11 // pred_fallthru
          _
        // Predicated region
        $region21: #{tpu_custom_call.1} parent=11 // pred_check
          %p164 = pneg %p101
        $region22: #{tpu_custom_call.1} parent=11 // pred_check_branch
          %166 = sbr.rel (%p164) target = $region24
        $region23: #{tpu_custom_call.1} parent=11 // pred_region
          _
        $region24: #{tpu_custom_call.1} parent=11 // pred_fallthru
          _
        // Predicated region
        $region25: #{tpu_custom_call.1} parent=11 // pred_check
          %p167 = pneg %p122
        $region26: #{tpu_custom_call.1} parent=11 // pred_check_branch
          %169 = sbr.rel (%p167) target = $region28
        $region27: #{tpu_custom_call.1} parent=11 // pred_region
          _
        $region28: #{tpu_custom_call.1} parent=11 // pred_fallthru
          _
      $region12: #{tpu_custom_call.1} parent=5 // pred_fallthru
        _
      %p170 = scmp.lt.s32.totalorder %s12, 2
      // Predicated region
      $region29: #{tpu_custom_call.1} parent=5 // pred_check
        %p171 = pneg %p170
      $region30: #{tpu_custom_call.1} parent=5 // pred_check_branch
        %173 = sbr.rel (%p171) target = $region32
      $region31: #{tpu_custom_call.1} parent=5 // pred_region
        // Predicated region
        $region33: #{tpu_custom_call.1} parent=31 // pred_check
          %p174 = pneg %p32
        $region34: #{tpu_custom_call.1} parent=31 // pred_check_branch
          %176 = sbr.rel (%p174) target = $region36
        $region35: #{tpu_custom_call.1} parent=31 // pred_region
          %p177 = scmp.lt.s32.totalorder %s12, 1
          %s178 = scalar_select %p177, %s12, 1
          %s179 = smul.addr %s178, 4
          %s180 = smul.addr %s179, 2
          %s181 = scalar_lea.vmem %s0, %s180
        $region36: #{tpu_custom_call.1} parent=31 // pred_fallthru
          _
      $region32: #{tpu_custom_call.1} parent=5 // pred_fallthru
        _
      %p182 = scmp.le.s32.totalorder 1, %s12
      %p183 = scmp.lt.s32.totalorder %s12, 3
      %p184 = pnand %p182, %p183
      %p185 = pneg %p184
      // Predicated region
      $region37: #{tpu_custom_call.1} parent=5 // pred_check
        _
      $region38: #{tpu_custom_call.1} parent=5 // pred_check_branch
        %187 = sbr.rel (%p184) target = $region40
      $region39: #{tpu_custom_call.1} parent=5 // pred_region
        %s188 = ssub.s32 %s12, 1
        %p189 = scmp.lt.s32.totalorder %s17, 1
        %s190 = scalar_select %p189, %s17, 1
        %s191 = smul.addr %s190, 4
        %s192 = smul.addr %s191, 2
        %s193 = scalar_lea.vmem %s0, %s192
        %p194 = pneg %p38
        %p195 = pneg %p35
        %p196 = pneg %p59
        %p197 = pneg %p56
        %p198 = pneg %p80
        %p199 = pneg %p77
        %p200 = pneg %p101
        %p201 = pneg %p98
        %p202 = pneg %p122
        %p203 = pneg %p119
        %p204 = pneg %p143
        %p205 = pneg %p140
        %p206 = scmp.lt.s32.totalorder %s17, 1
        %s207 = scalar_select %p206, %s17, 1
        %s208 = smul.addr %s207, 4
        %s209 = smul.addr %s208, 2
        %s210 = scalar_lea.vmem %s0, %s209
        %p212 = scmp.eq.s32.totalorder %s17, 0
        // Predicated region
        $region41: #{tpu_custom_call.1} parent=39 // pred_check
          %p213 = pneg %p212
        $region42: #{tpu_custom_call.1} parent=39 // pred_check_branch
          %215 = sbr.rel (%p213) target = $region44
        $region43: #{tpu_custom_call.1} parent=39 // pred_region
          %216 = vst [vmem:[#allocation2] sm:$0xcc] 0
          %vm217 = vcmask 519170
          %218 = vst.msk [vmem:[#allocation2 + $0x8] sm:$0xc] %vm217, 0
          %219 = vst [vmem:[#allocation2 + $0xc] sm:$0xcc] 0
          %220 = vst.msk [vmem:[#allocation2 + $0x14] sm:$0xc] %vm217, 0
          %221 = vst [vmem:[#allocation2 + $0x18] sm:$0xcc] 0
          %222 = vst.msk [vmem:[#allocation2 + $0x20] sm:$0xc] %vm217, 0
          %223 = vst [vmem:[#allocation2 + $0x24] sm:$0xcc] 0
          %224 = vst.msk [vmem:[#allocation2 + $0x2c] sm:$0xc] %vm217, 0
          %225 = vst [vmem:[#allocation2 + $0x30] sm:$0xcc] 0
          %226 = vst.msk [vmem:[#allocation2 + $0x38] sm:$0xc] %vm217, 0
          %227 = vst [vmem:[#allocation2 + $0x3c] sm:$0xcc] 0
          %228 = vst.msk [vmem:[#allocation2 + $0x44] sm:$0xc] %vm217, 0
          %229 = vst [vmem:[#allocation2 + $0x48] sm:$0xcc] 0
          %230 = vst.msk [vmem:[#allocation2 + $0x50] sm:$0xc] %vm217, 0
          %231 = vst [vmem:[#allocation2 + $0x54] sm:$0xcc] 0
          %232 = vst.msk [vmem:[#allocation2 + $0x5c] sm:$0xc] %vm217, 0
          %233 = vst [vmem:[#allocation2 + $0x60] sm:$0xcc] 0
          %234 = vst.msk [vmem:[#allocation2 + $0x68] sm:$0xc] %vm217, 0
        $region44: #{tpu_custom_call.1} parent=39 // pred_fallthru
          _
        %v235 = vld [vmem:[%s210] sm:$0xff]
        %v237 = vcombine.high %v235, %v235
        %v239 = vunpack.c.l.s4 1983009808
        %v240 = vunpack.c.0.s8 %v239
        %v241 = vlaneseq
        %v242 = vshrl.u32 %v241, 7
        %v243 = vsub.s32 %v240, %v242
        %v244 = vrot.slane %v235, %v243
        %v246 = vunpack.c.l.s4 1983009808
        %v247 = vunpack.c.0.s8 %v246
        %v248 = vlaneseq
        %v249 = vshrl.u32 %v248, 7
        %v250 = vsub.s32 %v247, %v249
        %v251 = vrot.slane %v237, %v250
        %254 = vst [vmem:[#allocation2] sm:$0x33] %v244
        %vm255 = vcmask 517120
        %256 = vst.msk [vmem:[#allocation2 + $0x8] sm:$0x3] %vm255, %v251
        %257 = vrot.lane.b32.xlu0 %v244, 126
        %v258 = vpop.permute.xlu0 %257
        %259 = vrot.lane.b32.xlu0 %v251, 126
        %v260 = vpop.permute.xlu0 %259
        %v261 = vrot.slane %v258, 4
        %v262 = vrot.slane %v260, 4
        %vm263 = vcmask 1043456
        %v264 = vsel %vm263, %v261, %v262
        %vm265 = vcmask 1031168
        %v266 = vsel %vm265, %v258, %v264
        %269 = vst [vmem:[#allocation2 + $0xc] sm:$0x33] %v266
        %270 = vst.msk [vmem:[#allocation2 + $0x14] sm:$0x3] %vm255, %v260
        %271 = vrot.lane.b32.xlu0 %v244, 124
        %v272 = vpop.permute.xlu0 %271
        %273 = vrot.lane.b32.xlu0 %v251, 124
        %v274 = vpop.permute.xlu0 %273
        %v275 = vrot.slane %v272, 4
        %v276 = vrot.slane %v274, 4
        %v277 = vsel %vm263, %v275, %v276
        %vm278 = vcmask 1014784
        %v279 = vsel %vm278, %v272, %v277
        %282 = vst [vmem:[#allocation2 + $0x18] sm:$0x33] %v279
        %283 = vst.msk [vmem:[#allocation2 + $0x20] sm:$0x3] %vm255, %v274
        %284 = vrot.lane.b32.xlu0 %v244, 88
        %v285 = vpop.permute.xlu0 %284
        %286 = vrot.lane.b32.xlu0 %v251, 88
        %v287 = vpop.permute.xlu0 %286
        %v288 = vrot.slane %v285, 4
        %v289 = vrot.slane %v287, 4
        %v290 = vsel %vm263, %v288, %v289
        %vm291 = vcmask 719872
        %v292 = vsel %vm291, %v285, %v290
        %295 = vst [vmem:[#allocation2 + $0x24] sm:$0x33] %v292
        %296 = vst.msk [vmem:[#allocation2 + $0x2c] sm:$0x3] %vm255, %v287
        %297 = vrot.lane.b32.xlu0 %v244, 86
        %v298 = vpop.permute.xlu0 %297
        %299 = vrot.lane.b32.xlu0 %v251, 86
        %v300 = vpop.permute.xlu0 %299
        %v301 = vrot.slane %v298, 4
        %v302 = vrot.slane %v300, 4
        %v303 = vsel %vm263, %v301, %v302
        %vm304 = vcmask 703488
        %v305 = vsel %vm304, %v298, %v303
        %308 = vst [vmem:[#allocation2 + $0x30] sm:$0x33] %v305
        %309 = vst.msk [vmem:[#allocation2 + $0x38] sm:$0x3] %vm255, %v300
        %310 = vrot.lane.b32.xlu0 %v244, 84
        %v311 = vpop.permute.xlu0 %310
        %312 = vrot.lane.b32.xlu0 %v251, 84
        %v313 = vpop.permute.xlu0 %312
        %v314 = vrot.slane %v311, 4
        %v315 = vrot.slane %v313, 4
        %v316 = vsel %vm263, %v314, %v315
        %vm317 = vcmask 687104
        %v318 = vsel %vm317, %v311, %v316
        %321 = vst [vmem:[#allocation2 + $0x3c] sm:$0x33] %v318
        %322 = vst.msk [vmem:[#allocation2 + $0x44] sm:$0x3] %vm255, %v313
        %323 = vrot.lane.b32.xlu0 %v244, 48
        %v324 = vpop.permute.xlu0 %323
        %325 = vrot.lane.b32.xlu0 %v251, 48
        %v326 = vpop.permute.xlu0 %325
        %v327 = vrot.slane %v324, 4
        %v328 = vrot.slane %v326, 4
        %v329 = vsel %vm263, %v327, %v328
        %vm330 = vcmask 392192
        %v331 = vsel %vm330, %v324, %v329
        %v332 = vsel %vm330, %v326, %v328
        %335 = vst [vmem:[#allocation2 + $0x48] sm:$0x33] %v331
        %336 = vst.msk [vmem:[#allocation2 + $0x50] sm:$0x3] %vm255, %v332
        %337 = vrot.lane.b32.xlu0 %v244, 46
        %v338 = vpop.permute.xlu0 %337
        %339 = vrot.lane.b32.xlu0 %v251, 46
        %v340 = vpop.permute.xlu0 %339
        %v341 = vrot.slane %v338, 4
        %v342 = vrot.slane %v340, 4
        %v343 = vsel %vm263, %v341, %v342
        %vm344 = vcmask 375808
        %v345 = vsel %vm344, %v338, %v343
        %v346 = vsel %vm344, %v340, %v342
        %349 = vst [vmem:[#allocation2 + $0x54] sm:$0x33] %v345
        %350 = vst.msk [vmem:[#allocation2 + $0x5c] sm:$0x3] %vm255, %v346
        %351 = vrot.lane.b32.xlu0 %v244, 44
        %v352 = vpop.permute.xlu0 %351
        %353 = vrot.lane.b32.xlu0 %v251, 44
        %v354 = vpop.permute.xlu0 %353
        %v355 = vrot.slane %v352, 4
        %v356 = vrot.slane %v354, 4
        %v357 = vsel %vm263, %v355, %v356
        %vm358 = vcmask 359424
        %v359 = vsel %vm358, %v352, %v357
        %v360 = vsel %vm358, %v354, %v356
        %363 = vst [vmem:[#allocation2 + $0x60] sm:$0x33] %v359
        %364 = vst.msk [vmem:[#allocation2 + $0x68] sm:$0x3] %vm255, %v360
        %v365 = vld [vmem:[%s1] sm:$0xf]
        %v366 = vld [vmem:[#allocation2] sm:$0xff]
        %v367 = vld [vmem:[#allocation2 + $0x8] sm:$0xf]
        %v368 = vld [vmem:[#allocation2 + $0xc] sm:$0xff]
        %v369 = vld [vmem:[#allocation2 + $0x14] sm:$0xf]
        %v370 = vld [vmem:[#allocation2 + $0x18] sm:$0xff]
        %v371 = vld [vmem:[#allocation2 + $0x20] sm:$0xf]
        %v372 = vld [vmem:[#allocation2 + $0x24] sm:$0xff]
        %v373 = vld [vmem:[#allocation2 + $0x2c] sm:$0xf]
        %v374 = vld [vmem:[#allocation2 + $0x30] sm:$0xff]
        %v375 = vld [vmem:[#allocation2 + $0x38] sm:$0xf]
        %v376 = vld [vmem:[#allocation2 + $0x3c] sm:$0xff]
        %v377 = vld [vmem:[#allocation2 + $0x44] sm:$0xf]
        %v378 = vld [vmem:[#allocation2 + $0x48] sm:$0xff]
        %v379 = vld [vmem:[#allocation2 + $0x50] sm:$0xf]
        %v380 = vld [vmem:[#allocation2 + $0x54] sm:$0xff]
        %v381 = vld [vmem:[#allocation2 + $0x5c] sm:$0xf]
        %v382 = vld [vmem:[#allocation2 + $0x60] sm:$0xff]
        %v383 = vld [vmem:[#allocation2 + $0x68] sm:$0xf]
        %v402 = vunpack.c.l.b16 %v366
        %v403 = vunpack.c.h.b16 %v366
        %v404 = vunpack.c.l.b16 %v367
        %v405 = vunpack.c.l.b16 %v368
        %v406 = vunpack.c.h.b16 %v368
        %v407 = vunpack.c.l.b16 %v369
        %v408 = vunpack.c.l.b16 %v370
        %v409 = vunpack.c.h.b16 %v370
        %v410 = vunpack.c.l.b16 %v371
        %v411 = vunpack.c.l.b16 %v372
        %v412 = vunpack.c.h.b16 %v372
        %v413 = vunpack.c.l.b16 %v373
        %v414 = vunpack.c.l.b16 %v374
        %v415 = vunpack.c.h.b16 %v374
        %v416 = vunpack.c.l.b16 %v375
        %v417 = vunpack.c.l.b16 %v376
        %v418 = vunpack.c.h.b16 %v376
        %v419 = vunpack.c.l.b16 %v377
        %v420 = vunpack.c.l.b16 %v378
        %v421 = vunpack.c.h.b16 %v378
        %v422 = vunpack.c.l.b16 %v379
        %v423 = vunpack.c.l.b16 %v380
        %v424 = vunpack.c.h.b16 %v380
        %v425 = vunpack.c.l.b16 %v381
        %v426 = vunpack.c.l.b16 %v382
        %v427 = vunpack.c.h.b16 %v382
        %v428 = vunpack.c.l.b16 %v383
        %v429 = vpack.c.b16 %v405, %v402
        %v430 = vpack.c.b16 %v406, %v403
        %v431 = vpack.c.b16 %v407, %v404
        %v432 = vpack.c.b16 %v411, %v408
        %v433 = vpack.c.b16 %v412, %v409
        %v434 = vpack.c.b16 %v413, %v410
        %v435 = vpack.c.b16 %v417, %v414
        %v436 = vpack.c.b16 %v418, %v415
        %v437 = vpack.c.b16 %v419, %v416
        %v438 = vpack.c.b16 %v423, %v420
        %v439 = vpack.c.b16 %v424, %v421
        %v440 = vpack.c.b16 %v425, %v422
        %v441 = vpack.c.b16 %v426, %v426
        %v442 = vpack.c.b16 %v427, %v427
        %v443 = vpack.c.b16 %v428, %v428
        %vm456 = vcmask 588800
        %v458 = vsel %vm456, %v365, 0
        %vm460 = vcmask 1043456
        %v462 = vsel %vm460, %v441, 0
        %v465 = vsel %vm460, %v442, 0
        %v468 = vsel %vm460, %v443, 0
        %470 = vmatprep.subr.bf16.mxu0 %v430
        %471 = vmatpush1.bf16.msra.mxu0 %v429
        %472 = vmatprep.subr.bf16.mxu0 %v433
        %473 = vmatpush1.bf16.msra.mxu0 %v432
        %474 = vmatprep.subr.bf16.mxu0 %v436
        %475 = vmatpush1.bf16.msra.mxu0 %v435
        %476 = vmatprep.subr.bf16.mxu0 %v439
        %477 = vmatpush1.bf16.msra.mxu0 %v438
        %478 = vmatprep.subr.bf16.mxu0 %v465
        %479 = vmatpush1.bf16.msra.mxu0 %v462
        %480 = vmatprep.subr.bf16.mxu0 0
        %481 = vmatpush1.bf16.msra.mxu0 0
        %482 = vmatprep.subr.bf16.mxu0 0
        %483 = vmatpush1.bf16.msra.mxu0 0
        %484 = vmatprep.subr.bf16.mxu0 0
        %485 = vmatpush1.bf16.msra.mxu0 0
        %486 = vmatprep.subr.bf16.mxu0 0
        %487 = vmatpush1.bf16.msra.mxu0 0
        %488 = vmatprep.subr.bf16.mxu0 0
        %489 = vmatpush1.bf16.msra.mxu0 0
        %490 = vmatprep.subr.bf16.mxu0 0
        %491 = vmatpush1.bf16.msra.mxu0 0
        %492 = vmatprep.subr.bf16.mxu0 0
        %493 = vmatpush1.bf16.msra.mxu0 0
        %494 = vmatprep.subr.bf16.mxu0 0
        %495 = vmatpush1.bf16.msra.mxu0 0
        %496 = vmatprep.subr.bf16.mxu0 0
        %497 = vmatpush1.bf16.msra.mxu0 0
        %498 = vmatprep.subr.bf16.mxu0 0
        %499 = vmatpush1.bf16.msra.mxu0 0
        %500 = vmatprep.subr.bf16.mxu0 0
        %501 = vmatpush1.bf16.msra.mxu0 0
        %502 = vmatprep.mubr.bf16.mxu0 0
        %503 = vmatmul.mubr.bf16.gmra.mrb[0].mxu0 %v458
        %v504 = vpop.f32.mrb[0].mxu0
        %v505 = vadd.f32 0.0, %v504
        %v506 = vpop.f32.mrb[0].mxu0
        %v507 = vadd.f32 0.0, %v506
        %v508 = vpop.f32.mrb[0].mxu0
        %v509 = vpop.f32.mrb[0].mxu0
        %510 = vdwg.mxu0
        %511 = vmatprep.subr.bf16.mxu0 0
        %512 = vmatpush1.bf16.msra.mxu0 %v431
        %513 = vmatprep.subr.bf16.mxu0 0
        %514 = vmatpush1.bf16.msra.mxu0 %v434
        %515 = vmatprep.subr.bf16.mxu0 0
        %516 = vmatpush1.bf16.msra.mxu0 %v437
        %517 = vmatprep.subr.bf16.mxu0 0
        %518 = vmatpush1.bf16.msra.mxu0 %v440
        %519 = vmatprep.subr.bf16.mxu0 0
        %520 = vmatpush1.bf16.msra.mxu0 %v468
        %521 = vmatprep.subr.bf16.mxu0 0
        %522 = vmatpush1.bf16.msra.mxu0 0
        %523 = vmatprep.subr.bf16.mxu0 0
        %524 = vmatpush1.bf16.msra.mxu0 0
        %525 = vmatprep.subr.bf16.mxu0 0
        %526 = vmatpush1.bf16.msra.mxu0 0
        %527 = vmatprep.subr.bf16.mxu0 0
        %528 = vmatpush1.bf16.msra.mxu0 0
        %529 = vmatprep.subr.bf16.mxu0 0
        %530 = vmatpush1.bf16.msra.mxu0 0
        %531 = vmatprep.subr.bf16.mxu0 0
        %532 = vmatpush1.bf16.msra.mxu0 0
        %533 = vmatprep.subr.bf16.mxu0 0
        %534 = vmatpush1.bf16.msra.mxu0 0
        %535 = vmatprep.subr.bf16.mxu0 0
        %536 = vmatpush1.bf16.msra.mxu0 0
        %537 = vmatprep.subr.bf16.mxu0 0
        %538 = vmatpush1.bf16.msra.mxu0 0
        %539 = vmatprep.subr.bf16.mxu0 0
        %540 = vmatpush1.bf16.msra.mxu0 0
        %541 = vmatprep.subr.bf16.mxu0 0
        %542 = vmatpush1.bf16.msra.mxu0 0
        %543 = vmatprep.mubr.bf16.mxu0 0
        %544 = vmatmul.mubr.bf16.gmra.mrb[0].mxu0 %v458
        %v545 = vpop.f32.mrb[0].mxu0
        %v546 = vadd.f32 0.0, %v545
        %v547 = vpop.f32.mrb[0].mxu0
        %v548 = vpop.f32.mrb[0].mxu0
        %v549 = vpop.f32.mrb[0].mxu0
        %550 = vdwg.mxu0
        %s551 = smul.u32 %s17, 3
        %s552 = smul.addr %s551, 8
        %s553 = scalar_lea.vmem [#allocation3], %s552
        %554 = vst [vmem:[%s553] sm:$0xff] %v505
        %555 = vst [vmem:[%s553 + $0x8] sm:$0xff] %v507
        %vm556 = vcmask 523264
        %557 = vst.msk [vmem:[%s553 + $0x10] sm:$0xff] %vm556, %v546
        %p558 = scmp.eq.s32.totalorder %s17, 1
        // Predicated region
        $region45: #{tpu_custom_call.1} parent=39 // pred_check
          %p559 = pneg %p558
        $region46: #{tpu_custom_call.1} parent=39 // pred_check_branch
          %561 = sbr.rel (%p559) target = $region48
        $region47: #{tpu_custom_call.1} parent=39 // pred_region
          %v562 = vld [vmem:[#allocation3] sm:$0xff]
          %v563 = vld [vmem:[#allocation3 + $0x8] sm:$0xff]
          %v564 = vld [vmem:[#allocation3 + $0x10] sm:$0xff]
          %v565 = vld [vmem:[#allocation3 + $0x18] sm:$0xff]
          %v566 = vld [vmem:[#allocation3 + $0x20] sm:$0xff]
          %v567 = vld [vmem:[#allocation3 + $0x28] sm:$0xff]
          %v568 = vld [vmem:[%s4] sm:$0x7]
          %v570 = vlaneseq
          %v571 = vshrl.u32 %v570, 7
          %v572 = vsub.s32 0, %v571
          %v573 = vrot.slane %v568, %v572
          %v574 = vlaneseq
          %v575 = vshrl.u32 %v574, 7
          %v576 = vsub.s32 1, %v575
          %v577 = vrot.slane %v568, %v576
          %v578 = vlaneseq
          %v579 = vshrl.u32 %v578, 7
          %v580 = vsub.s32 2, %v579
          %v581 = vrot.slane %v568, %v580
          %v585 = vmul.f32 %v562, %v573
          %v586 = vmul.f32 %v563, %v577
          %v587 = vmul.f32 %v564, %v581
          %v588 = vadd.f32 %v585, %v586
          %v589 = vsel %vm556, %v587, 0.0
          %v590 = vadd.f32 %v588, %v589
          %591 = vadd.xlane.f32.xlu0 %v590
          %v592 = vpop.xlane.xlu0 %591
          %v593 = vadd.f32 %v592, 0.0
          %v594 = vmul.f32 %v565, %v573
          %v595 = vmul.f32 %v566, %v577
          %v596 = vmul.f32 %v567, %v581
          %v597 = vadd.f32 %v594, %v595
          %v598 = vsel %vm556, %v596, 0.0
          %v599 = vadd.f32 %v597, %v598
          %600 = vadd.xlane.f32.xlu0 %v599
          %v601 = vpop.xlane.xlu0 %600
          %v602 = vadd.f32 %v593, %v601
          %v603 = vmul.f32 %v602, 0.001953125
          %v604 = vsub.f32 %v562, %v603
          %v605 = vsub.f32 %v563, %v603
          %v606 = vsub.f32 %v564, %v603
          %v607 = vmul.f32 %v604, %v573
          %v608 = vmul.f32 %v605, %v577
          %v609 = vmul.f32 %v606, %v581
          %v610 = vmul.f32 %v607, %v607
          %v611 = vmul.f32 %v608, %v608
          %v612 = vmul.f32 %v609, %v609
          %v613 = vadd.f32 %v610, %v611
          %v614 = vsel %vm556, %v612, 0.0
          %v615 = vadd.f32 %v613, %v614
          %616 = vadd.xlane.f32.xlu0 %v615
          %v617 = vpop.xlane.xlu0 %616
          %v618 = vadd.f32 %v617, 0.0
          %v619 = vsub.f32 %v565, %v603
          %v620 = vsub.f32 %v566, %v603
          %v621 = vsub.f32 %v567, %v603
          %v622 = vmul.f32 %v619, %v573
          %v623 = vmul.f32 %v620, %v577
          %v624 = vmul.f32 %v621, %v581
          %v625 = vmul.f32 %v622, %v622
          %v626 = vmul.f32 %v623, %v623
          %v627 = vmul.f32 %v624, %v624
          %v628 = vadd.f32 %v625, %v626
          %v629 = vsel %vm556, %v627, 0.0
          %v630 = vadd.f32 %v628, %v629
          %631 = vadd.xlane.f32.xlu0 %v630
          %v632 = vpop.xlane.xlu0 %631
          %v633 = vadd.f32 %v618, %v632
          %v634 = vmul.f32 %v633, 0.001953125
          %v635 = vld [vmem:[%s2] sm:$0xff]
          %v636 = vadd.f32 %v634, 1e-05
          %v637 = vrsqrt.pop %v636
          %v638 = vmul.f32 %v635, %v637
          %v639 = vld [vmem:[%s3] sm:$0xff]
          %v640 = vmul.f32 %v603, %v638
          %v641 = vsub.f32 %v639, %v640
          %643 = vset.pattern.permute.xlu0 0
          %644 = vperm.xlu0 %643, %v638
          %v645 = vpop.permute.xlu0 %644
          %v647 = vmul.f32 %v562, %v645
          %v648 = vmul.f32 %v563, %v645
          %v649 = vmul.f32 %v564, %v645
          %651 = vset.pattern.permute.xlu0 0
          %652 = vperm.xlu0 %651, %v641
          %v653 = vpop.permute.xlu0 %652
          %v655 = vadd.f32 %v647, %v653
          %v656 = vadd.f32 %v648, %v653
          %v657 = vadd.f32 %v649, %v653
          %v658 = vmax.f32 %v655, 0.0
          %v659 = vmax.f32 %v656, 0.0
          %v660 = vmax.f32 %v657, 0.0
          %661 = vst [vmem:[#allocation3] sm:$0xff] %v658
          %662 = vst [vmem:[#allocation3 + $0x8] sm:$0xff] %v659
          %663 = vst.msk [vmem:[#allocation3 + $0x10] sm:$0xff] %vm556, %v660
          %v664 = vmul.f32 %v565, %v645
          %v665 = vmul.f32 %v566, %v645
          %v666 = vmul.f32 %v567, %v645
          %v667 = vadd.f32 %v664, %v653
          %v668 = vadd.f32 %v665, %v653
          %v669 = vadd.f32 %v666, %v653
          %v670 = vmax.f32 %v667, 0.0
          %v671 = vmax.f32 %v668, 0.0
          %v672 = vmax.f32 %v669, 0.0
          %s673 = scalar_lea.vmem [#allocation3], 24
          %674 = vst [vmem:[%s673] sm:$0xff] %v670
          %675 = vst [vmem:[%s673 + $0x8] sm:$0xff] %v671
          %676 = vst.msk [vmem:[%s673 + $0x10] sm:$0xff] %vm556, %v672
        $region48: #{tpu_custom_call.1} parent=39 // pred_fallthru
          _
        // Predicated region
        $region49: #{tpu_custom_call.1} parent=39 // pred_check
          %p677 = pneg %p140
        $region50: #{tpu_custom_call.1} parent=39 // pred_check_branch
          %679 = sbr.rel (%p677) target = $region52
        $region51: #{tpu_custom_call.1} parent=39 // pred_region
          %s681 = ssub.s32 768, 768
          %682 = vsyncadd [#allocation4], %s681
          %s683 = sshll.u32 [#allocation3], 4
          %s684 = int_to_ptr.vmem [resolvable:$true] %s683
          %689 = dma.vmem_to_hbm [thread:$0]  %s684, 768, %s5, [#allocation4], 384, 384, 24
        $region52: #{tpu_custom_call.1} parent=39 // pred_fallthru
          _
        // Predicated region
        $region53: #{tpu_custom_call.1} parent=39 // pred_check
          %p690 = pneg %p140
        $region54: #{tpu_custom_call.1} parent=39 // pred_check_branch
          %692 = sbr.rel (%p690) target = $region56
        $region55: #{tpu_custom_call.1} parent=39 // pred_region
          %693 = dma.done [#allocation4], 768
        $region56: #{tpu_custom_call.1} parent=39 // pred_fallthru
          _
      $region40: #{tpu_custom_call.1} parent=5 // pred_fallthru
        _
      %p694 = scmp.le.s32.totalorder 2, %s12
      // Predicated region
      $region57: #{tpu_custom_call.1} parent=5 // pred_check
        %p695 = pneg %p694
      $region58: #{tpu_custom_call.1} parent=5 // pred_check_branch
        %697 = sbr.rel (%p695) target = $region60
      $region59: #{tpu_custom_call.1} parent=5 // pred_region
        %s698 = ssub.s32 %s12, 2
      $region60: #{tpu_custom_call.1} parent=5 // pred_fallthru
        _
    $region6: #{tpu_custom_call.1} parent=1 // loop_footer
      %s16 = sadd.s32 1, %s12
    $region7: #{tpu_custom_call.1} parent=1 // loop_footer_branch
      %11 = sbr.rel target = $region3
    $region8: #{tpu_custom_call.1} parent=1 // loop_exit
      _
    %699 = vsyncpa [#allocation4], 1
    %s700 = scalar_lea.sflag [#allocation4], 1
    %701 = vsyncpa %s700, 1

</llo_original>
